<compile_context>
chip_gen: v7x
topology: tpu7x:2x2x1
jax: 0.10.0
libtpu: 0.0.40
codegen_flags: <defaults>
</compile_context>

<pallas_src>
import functools
import math

import jax
import jax.numpy as jnp
from jax.experimental import pallas as pl
from jax.experimental.pallas import tpu as pltpu


def _rms_norm_kernel(x_ref, w_ref, o_ref, *, eps):
    # Accumulate in float32 (>= promoted dtype for bf16/f32 mixes).
    x = x_ref[...].astype(jnp.float32)          # (tile_rows, H)
    w = w_ref[...].astype(jnp.float32)          # (1, H)
    ms = jnp.mean(x * x, axis=-1, keepdims=True)
    inv = jax.lax.rsqrt(ms + eps)
    o_ref[...] = (x * inv * w).astype(o_ref.dtype)


def _round_up(n, m):
    return ((n + m - 1) // m) * m


def mixed_fused_rms_norm(x, weight, eps=1e-5, *, tile_rows=None):
    """RMSNorm over the last dim of `x`, scaled by `weight` (shape (H,)).

    Output dtype follows the PyTorch module: the promoted dtype cast back to
    weight.dtype.
    """
    assert weight.ndim == 1
    H = weight.shape[0]
    assert x.shape[-1] == H

    out_dtype = weight.dtype  # module casts the result back to weight dtype

    lead_shape = x.shape[:-1]
    R = int(math.prod(lead_shape)) if lead_shape else 1
    x2d = x.reshape(R, H)
    w2d = weight.reshape(1, H)

    in_bytes = jnp.dtype(x.dtype).itemsize
    out_bytes = jnp.dtype(out_dtype).itemsize

    if tile_rows is None:
        # Per grid step we hold 2 buffers x (input block + output block).
        # 24 MiB budget: big enough to amortize the ~0.35 us/step overhead and
        # approach the HBM roofline, small enough to double-buffer on v7x.
        budget = 24 * 1024 * 1024
        per_row = 2 * H * (in_bytes + out_bytes)
        tr = max(16, (budget // per_row) // 16 * 16)
        tr = min(tr, 1024)
        # Don't pick a tile far larger than the actual row count.
        tile_rows = min(tr, max(16, _round_up(R, 16)))

    grid = pl.cdiv(R, tile_rows)

    # Scoped-VMEM request: double-buffered in/out blocks + weight, with slack.
    vmem_bytes = 2 * tile_rows * H * (in_bytes + out_bytes) + 2 * H * 4
    vmem_limit = int(min(64 * 1024 * 1024, max(16 * 1024 * 1024, 2 * vmem_bytes)))

    out2d = pl.pallas_call(
        functools.partial(_rms_norm_kernel, eps=float(eps)),
        out_shape=jax.ShapeDtypeStruct((R, H), out_dtype),
        grid_spec=pltpu.PrefetchScalarGridSpec(
            num_scalar_prefetch=0,
            grid=(grid,),
            in_specs=[
                pl.BlockSpec((tile_rows, H), lambda i: (i, 0)),
                # Constant block index: the (1, H) weight tile is fetched once
                # and reused across grid steps.
                pl.BlockSpec((1, H), lambda i: (0, 0)),
            ],
            out_specs=pl.BlockSpec((tile_rows, H), lambda i: (i, 0)),
        ),
        compiler_params=pltpu.CompilerParams(
            dimension_semantics=("parallel",),   # lets v7x shard rows across its 2 TCs
            vmem_limit_bytes=vmem_limit,
        ),
    )(x2d, w2d)

    return out2d.reshape(*lead_shape, H)


def _reference_rms_norm(x, weight, eps):
    acc = jnp.promote_types(x.dtype, weight.dtype)
    xf = x.astype(acc)
    wf = weight.astype(acc)
    ms = jnp.mean(xf * xf, axis=-1, keepdims=True)
    y = xf * jax.lax.rsqrt(ms + eps) * wf
    return y.astype(weight.dtype)


if __name__ == "__main__":
    key = jax.random.PRNGKey(0)
    eps = 1e-5

    # Mixed precision: bf16 activations, f32 weight (promote -> f32, out -> f32).
    batch, seq, hidden = 2, 8, 128
    x = jax.random.normal(key, (batch, seq, hidden), dtype=jnp.float32).astype(jnp.bfloat16)
    # Deterministic parameter init, matching reset_parameters() (add_unit_offset=False -> ones).
    weight = jnp.ones((hidden,), dtype=jnp.float32)

    out = mixed_fused_rms_norm(x, weight, eps)
    out = jax.block_until_ready(out)
    ref = _reference_rms_norm(x, weight, eps)
    assert out.shape == (batch, seq, hidden)
    assert out.dtype == weight.dtype
    assert jnp.allclose(out, ref, atol=1e-2, rtol=1e-2)

    # Ragged row count (exercises the partial last block, no host-side padding).
    key2 = jax.random.PRNGKey(1)
    x2 = jax.random.normal(key2, (3, 5, hidden), dtype=jnp.float32).astype(jnp.bfloat16)
    out2 = jax.block_until_ready(mixed_fused_rms_norm(x2, weight, eps))
    ref2 = _reference_rms_norm(x2, weight, eps)
    assert out2.shape == (3, 5, hidden)
    assert jnp.allclose(out2, ref2, atol=1e-2, rtol=1e-2)

    print("KERNEL_OK")
</pallas_src>

<mosaic_0001>
module attributes {stable_mosaic.version = 11 : i64} {
  func.func @_rms_norm_kernel(%arg0: i32, %arg1: memref<16x128xbf16, #tpu.memory_space<vmem>>, %arg2: memref<1x128xf32, #tpu.memory_space<vmem>>, %arg3: memref<16x128xf32, #tpu.memory_space<vmem>>) attributes {dimension_semantics = [#tpu.dimension_semantics<parallel>], iteration_bounds = array<i64: 1>, scalar_prefetch = 0 : i64, scratch_operands = 0 : i64, tpu.core_type = #tpu.core_type<tc>, window_params = [{transform_indices = @transform_0, window_bounds = array<i64: 16, 128>}, {pipeline_mode = #tpu.pipeline_mode<synchronous>, transform_indices = @transform_1, window_bounds = array<i64: 1, 128>}, {transform_indices = @transform_2, window_bounds = array<i64: 16, 128>}]} {
    %c0 = arith.constant 0 : index
    %c0_0 = arith.constant 0 : index
    %0 = vector.load %arg1[%c0, %c0_0] : memref<16x128xbf16, #tpu.memory_space<vmem>>, vector<16x128xbf16>
    %1 = arith.extf %0 : vector<16x128xbf16> to vector<16x128xf32>
    %c0_1 = arith.constant 0 : index
    %c0_2 = arith.constant 0 : index
    %2 = vector.load %arg2[%c0_1, %c0_2] : memref<1x128xf32, #tpu.memory_space<vmem>>, vector<1x128xf32>
    %3 = arith.mulf %1, %1 : vector<16x128xf32>
    %cst = arith.constant dense<0.000000e+00> : vector<16xf32>
    %4 = vector.multi_reduction <add>, %3, %cst [1] : vector<16x128xf32> to vector<16xf32>
    %5 = vector.shape_cast %4 : vector<16xf32> to vector<16x1xf32>
    %cst_3 = arith.constant 1.280000e+02 : f32
    %6 = vector.broadcast %cst_3 : f32 to vector<16x1xf32>
    %7 = arith.divf %5, %6 : vector<16x1xf32>
    %cst_4 = arith.constant 9.99999974E-6 : f32
    %8 = vector.broadcast %cst_4 : f32 to vector<16x1xf32>
    %9 = arith.addf %7, %8 : vector<16x1xf32>
    %10 = math.rsqrt %9 : vector<16x1xf32>
    %11 = vector.broadcast %10 : vector<16x1xf32> to vector<16x128xf32>
    %12 = arith.mulf %1, %11 : vector<16x128xf32>
    %13 = vector.broadcast %2 : vector<1x128xf32> to vector<16x128xf32>
    %14 = arith.mulf %12, %13 : vector<16x128xf32>
    %c0_5 = arith.constant 0 : index
    %c0_6 = arith.constant 0 : index
    %15 = vector.load %arg3[%c0_5, %c0_6] : memref<16x128xf32, #tpu.memory_space<vmem>>, vector<16x128xf32>
    tpu.vector_store %arg3[%c0_5, %c0_6], %14 {strides = array<i32>} : memref<16x128xf32, #tpu.memory_space<vmem>>, vector<16x128xf32>,
    return
  }
  func.func @transform_0(%arg0: i32) -> (i32, i32) {
    %c0_i32 = arith.constant 0 : i32
    %c0_i32_0 = arith.constant 0 : i32
    return %arg0, %c0_i32 : i32, i32
  }
  func.func @transform_1(%arg0: i32) -> (i32, i32) {
    %c0_i32 = arith.constant 0 : i32
    %c0_i32_0 = arith.constant 0 : i32
    %c0_i32_1 = arith.constant 0 : i32
    return %c0_i32, %c0_i32_0 : i32, i32
  }
  func.func @transform_2(%arg0: i32) -> (i32, i32) {
    %c0_i32 = arith.constant 0 : i32
    %c0_i32_0 = arith.constant 0 : i32
    return %arg0, %c0_i32 : i32, i32
  }
}

</mosaic_0001>

<llo_original>
// kernel: tpu_custom_call.1
$region0: #{tpu_custom_call.1}
  #allocation0 [shape = 'u32[]', space=smem, size = 0x4, offset = 0x4, fixed_abs, tag = 'smem constant byte address 0x4 - core index']
  #allocation1 [shape = 'u32[144,128]{1,0:T(1,128)}', space=vmem, size = 0x12000, scoped, tag = 'internal scratch']
  %s0 = inlined_call_operand.hbm [shape: bf16[16,128], index: 0, kind: input, shape index: {}]
  %s1 = inlined_call_operand.vmem [shape: f32[1,128], index: 1, kind: input, shape index: {}]
  %s2 = inlined_call_operand.hbm [shape: f32[16,128], index: 2, kind: output, shape index: {}]
  %s3 = sld [smem:[#allocation0]]
  $region22: #{tpu_custom_call.1} parent=0
    _
  %s5 = ssub.s32 1, %s3
  %s6 = scalar_select 0, %s5, %s3
  $region1: #{tpu_custom_call.1} parent=0
    #allocation2 [shape = 'u8[4096]{0}', space=vmem, size = 0x1000, scoped, tag = 'input window, operand 0, single buffered']
    #allocation3 [shape = 's32[1]{0}', space=sflag, size = 0x4, scoped, tag = 'scoped memory for tpu_custom_call.1']
    #allocation4 [shape = 's32[1]{0}', space=sflag, size = 0x4, scoped, tag = 'scoped memory for tpu_custom_call.1']
    #allocation5 [shape = 'u8[8192]{0}', space=vmem, size = 0x2000, scoped, tag = 'output window, operand 0, single buffered']
    %7 = vsyncpa [#allocation3], 0
    %8 = vsyncpa [#allocation4], 0
    // Predicated region
    $region2: #{tpu_custom_call.1} parent=1 // pred_check
      _
    $region3: #{tpu_custom_call.1} parent=1 // pred_check_branch
      %10 = sbr.rel (0) target = $region5
    $region4: #{tpu_custom_call.1} parent=1 // pred_region
      %s12 = ssub.s32 128, 128
      %13 = vsyncadd [#allocation3], %s12
      %s14 = sshll.u32 [#allocation2], 4
      %s15 = int_to_ptr.vmem [resolvable:$true] %s14
      %20 = dma.hbm_to_vmem [thread:$0]  %s0, 128, %s15, [#allocation3], 64, 64, 4
    $region5: #{tpu_custom_call.1} parent=1 // pred_fallthru
      _
    // Predicated region
    $region6: #{tpu_custom_call.1} parent=1 // pred_check
      _
    $region7: #{tpu_custom_call.1} parent=1 // pred_check_branch
      %22 = sbr.rel (0) target = $region9
    $region8: #{tpu_custom_call.1} parent=1 // pred_region
      _
    $region9: #{tpu_custom_call.1} parent=1 // pred_fallthru
      _
    // Predicated region
    $region10: #{tpu_custom_call.1} parent=1 // pred_check
      _
    $region11: #{tpu_custom_call.1} parent=1 // pred_check_branch
      %24 = sbr.rel (0) target = $region13
    $region12: #{tpu_custom_call.1} parent=1 // pred_region
      %25 = dma.done [#allocation3], 128
    $region13: #{tpu_custom_call.1} parent=1 // pred_fallthru
      _
    %v26 = vld [vmem:[#allocation2] sm:$0xf]
    %v27 = vld [vmem:[#allocation2 + $0x4] sm:$0xf]
    %v28 = vunpack.c.l.bf16 %v26
    %v29 = vunpack.c.l.bf16 %v27
    %v30 = vld [vmem:[%s1] sm:$0x1]
    %v31 = vmul.f32 %v28, %v28
    %v32 = vmul.f32 %v29, %v29
    %33 = vadd.xlane.f32.xlu0 %v31
    %v34 = vpop.xlane.xlu0 %33
    %35 = vadd.xlane.f32.xlu0 %v32
    %v36 = vpop.xlane.xlu0 %35
    %v37 = vrcp.pop 128.0
    %v38 = vmul.f32 %v34, %v37
    %v39 = vmul.f32 %v36, %v37
    %v40 = vadd.f32 %v38, 1e-05
    %v41 = vadd.f32 %v39, 1e-05
    %v42 = vrsqrt.pop %v40
    %v43 = vrsqrt.pop %v41
    %v44 = vmul.f32 %v28, %v42
    %v45 = vmul.f32 %v29, %v43
    %v47 = vlaneseq
    %v48 = vshrl.u32 %v47, 7
    %v49 = vsub.s32 0, %v48
    %v50 = vrot.slane %v30, %v49
    %v52 = vmul.f32 %v44, %v50
    %v53 = vmul.f32 %v45, %v50
    %54 = vst [vmem:[#allocation5] sm:$0xff] %v52
    %55 = vst [vmem:[#allocation5 + $0x8] sm:$0xff] %v53
    // Predicated region
    $region14: #{tpu_custom_call.1} parent=1 // pred_check
      _
    $region15: #{tpu_custom_call.1} parent=1 // pred_check_branch
      %57 = sbr.rel (0) target = $region17
    $region16: #{tpu_custom_call.1} parent=1 // pred_region
      %s59 = ssub.s32 256, 256
      %60 = vsyncadd [#allocation4], %s59
      %s61 = sshll.u32 [#allocation5], 4
      %s62 = int_to_ptr.vmem [resolvable:$true] %s61
      %67 = dma.vmem_to_hbm [thread:$0]  %s62, 256, %s2, [#allocation4], 128, 128, 8
    $region17: #{tpu_custom_call.1} parent=1 // pred_fallthru
      _
    // Predicated region
    $region18: #{tpu_custom_call.1} parent=1 // pred_check
      _
    $region19: #{tpu_custom_call.1} parent=1 // pred_check_branch
      %69 = sbr.rel (0) target = $region21
    $region20: #{tpu_custom_call.1} parent=1 // pred_region
      %70 = dma.done [#allocation4], 256
    $region21: #{tpu_custom_call.1} parent=1 // pred_fallthru
      _
    %71 = vsyncpa [#allocation3], 1
    %72 = vsyncpa [#allocation4], 1

</llo_original>
